<compile_context>
chip_gen: v7x
topology: tpu7x:2x2x1
jax: 0.10.0
libtpu: 0.0.40
codegen_flags: <defaults>
</compile_context>

<pallas_src>
import functools
import math

import jax
import jax.numpy as jnp
from jax.experimental import pallas as pl
from jax.experimental.pallas import tpu as pltpu


def _round_up(x, m):
    return (x + m - 1) // m * m


# ---------------------------------------------------------------------------
# Path 1: table resident in VMEM (small / medium tables).
# ---------------------------------------------------------------------------
def _resident_embed_kernel(ids_ref, table_ref, out_ref, *, scale,
                           block_tokens, unroll):
    # ids_ref:   (n_pad,) int32 in SMEM (scalar-prefetched token ids)
    # table_ref: (V, D) embedding table, resident in VMEM (same block index
    #            at every grid step -> fetched once, never re-DMA'd)
    # out_ref:   (block_tokens, D) VMEM output block
    base = pl.program_id(0) * block_tokens

    @pl.loop(0, block_tokens // unroll)
    def _gather(o):
        t0 = pl.multiple_of(o * unroll, unroll)
        for u in range(unroll):                      # static inner unroll
            t = t0 + u
            row = ids_ref[base + t]
            out_ref[pl.ds(t, 1), :] = (
                table_ref[pl.ds(row, 1), :] * scale).astype(out_ref.dtype)


# ---------------------------------------------------------------------------
# Path 2: table in HBM, DMA row-gather directly into the output block.
# ---------------------------------------------------------------------------
def _hbm_gather_embed_kernel(ids_ref, table_hbm, out_ref, sem, *, scale,
                             block_tokens, unroll):
    # ids_ref:   (n_pad,) int32 in SMEM
    # table_hbm: (V, D) raw HBM ref (memory_space=pl.ANY, no auto-DMA)
    # out_ref:   (block_tokens, D) VMEM output block (DMA destination)
    # sem:       shared counting DMA semaphore for this block's row copies
    base = pl.program_id(0) * block_tokens

    # Issue all row gathers for this block; unrolled so descriptor pushes
    # (vector-misc slot) and address math (scalar slots) co-issue.
    @pl.loop(0, block_tokens // unroll)
    def _issue(o):
        t0 = pl.multiple_of(o * unroll, unroll)
        for u in range(unroll):
            t = t0 + u
            row = ids_ref[base + t]
            pltpu.make_async_copy(table_hbm.at[pl.ds(row, 1), :],
                                  out_ref.at[pl.ds(t, 1), :],
                                  sem).start()

    # ONE wait sized to the whole block: the shared counting semaphore is
    # byte-accounted and every row copy moved exactly D*itemsize bytes, so a
    # single (block_tokens, D) descriptor consumes all completions.
    # Invariant: all row copies share dtype/width with out_ref (asserted in
    # the wrapper via out dtype == table dtype).
    pltpu.make_async_copy(table_hbm.at[pl.ds(0, block_tokens), :],
                          out_ref, sem).wait()

    # Only VPU work in the kernel: scale by sqrt(d_model) in place.
    out_ref[...] = (out_ref[...] * scale).astype(out_ref.dtype)


def input_embedding(tokens, table, *, block_tokens=256,
                    vmem_table_limit_bytes=8 * 1024 * 1024):
    """tokens: (B, S) int; table: (V, D) -> (B, S, D) = table[tokens]*sqrt(D)."""
    B, S = tokens.shape
    V, D = table.shape
    n_tok = B * S
    scale = float(math.sqrt(D))
    itemsize = jnp.dtype(table.dtype).itemsize
    table_bytes = V * D * itemsize

    # Clamp like jnp/XLA gather (PyTorch nn.Embedding would raise on OOB ids);
    # also keeps every row access / DMA in bounds.
    ids = jnp.clip(tokens.reshape(-1).astype(jnp.int32), 0, V - 1)

    # Token block: multiple of 8 (f32 sublanes), no larger than padded count.
    blk = _round_up(min(block_tokens, _round_up(n_tok, 8)), 8)
    n_pad = _round_up(n_tok, blk)
    if n_pad != n_tok:
        # Padded slots gather row 0; sliced off below.
        ids = jnp.concatenate([ids, jnp.zeros((n_pad - n_tok,), jnp.int32)])
    # TODO(synk): for very large B*S, chunk the id stream per grid step
    # (SMEM pads 1-D arrays to next_pow2(4*n_pad) bytes).

    unroll = 8                                        # blk is a multiple of 8
    grid = (n_pad // blk,)
    cost = pl.CostEstimate(
        flops=n_tok * D,                              # the sqrt(D) scale
        transcendentals=0,
        bytes_accessed=2 * n_tok * D * itemsize + table_bytes + 4 * n_pad)

    if table_bytes <= vmem_table_limit_bytes:
        # --- Fast path: table resident in VMEM across the whole grid. ---
        kernel = functools.partial(_resident_embed_kernel, scale=scale,
                                   block_tokens=blk, unroll=unroll)
        out_flat = pl.pallas_call(
            kernel,
            out_shape=jax.ShapeDtypeStruct((n_pad, D), table.dtype),
            grid_spec=pltpu.PrefetchScalarGridSpec(
                num_scalar_prefetch=1,                        # ids -> SMEM
                grid=grid,
                in_specs=[pl.BlockSpec((V, D), lambda i, ids: (0, 0))],
                out_specs=pl.BlockSpec((blk, D), lambda i, ids: (i, 0)),
            ),
            compiler_params=pltpu.CompilerParams(
                dimension_semantics=("parallel",)),
            cost_estimate=cost,
        )(ids, table)
    else:
        # --- Fallback: table stays in HBM; per-row DMA gather into output. ---
        assert blk <= V, "token block larger than vocab on the HBM path"
        kernel = functools.partial(_hbm_gather_embed_kernel, scale=scale,
                                   block_tokens=blk, unroll=unroll)
        out_flat = pl.pallas_call(
            kernel,
            out_shape=jax.ShapeDtypeStruct((n_pad, D), table.dtype),
            grid_spec=pltpu.PrefetchScalarGridSpec(
                num_scalar_prefetch=1,
                grid=grid,
                in_specs=[pl.BlockSpec(memory_space=pl.ANY)],  # raw HBM ref
                out_specs=pl.BlockSpec((blk, D), lambda i, ids: (i, 0)),
                scratch_shapes=[pltpu.SemaphoreType.DMA(())],
            ),
            compiler_params=pltpu.CompilerParams(
                dimension_semantics=("parallel",)),
            cost_estimate=cost,
        )(ids, table)

    return out_flat[:n_tok].reshape(B, S, D)


if __name__ == "__main__":
    # Small shapes consistent with the module; D is a multiple of 128 so the
    # output stores are lane-dense.
    vocab_size = 512
    d_model = 128
    batch, seq = 2, 8

    key = jax.random.PRNGKey(0)
    k_tok, k_emb = jax.random.split(key)

    # Deterministic "parameters": embedding table ~ N(0,1) like nn.Embedding.
    table = jax.random.normal(k_emb, (vocab_size, d_model), dtype=jnp.float32)
    tokens = jax.random.randint(k_tok, (batch, seq), 0, vocab_size,
                                dtype=jnp.int32)

    ref = table[tokens] * math.sqrt(d_model)

    # Fast path (VMEM-resident table) -- covers the demo shape.
    out = jax.block_until_ready(input_embedding(tokens, table))
    assert out.shape == (batch, seq, d_model)
    assert jnp.allclose(out, ref, atol=1e-5, rtol=1e-5), "resident path mismatch"

    # Large-vocab fallback path (HBM row-gather DMA), forced via a 0 threshold
    # so both code paths are validated on hardware.
    out_hbm = jax.block_until_ready(
        input_embedding(tokens, table, vmem_table_limit_bytes=0))
    assert jnp.allclose(out_hbm, ref, atol=1e-5, rtol=1e-5), "HBM path mismatch"

    print("KERNEL_OK")
</pallas_src>

<mosaic_0001>
module attributes {stable_mosaic.version = 11 : i64} {
  func.func @_resident_embed_kernel(%arg0: i32, %arg1: memref<16xi32, #tpu.memory_space<smem>>, %arg2: memref<512x128xf32, #tpu.memory_space<vmem>>, %arg3: memref<16x128xf32, #tpu.memory_space<vmem>>) attributes {dimension_semantics = [#tpu.dimension_semantics<parallel>], iteration_bounds = array<i64: 1>, scalar_prefetch = 1 : i64, scratch_operands = 0 : i64, tpu.core_type = #tpu.core_type<tc>, window_params = [{pipeline_mode = #tpu.pipeline_mode<synchronous>, transform_indices = @transform_0, window_bounds = array<i64: 512, 128>}, {transform_indices = @transform_1, window_bounds = array<i64: 16, 128>}]} {
    %c16_i32 = arith.constant 16 : i32
    %0 = arith.muli %arg0, %c16_i32 : i32
    %c0_i32 = arith.constant 0 : i32
    %c2_i32 = arith.constant 2 : i32
    %1 = arith.addi %c0_i32, %c2_i32 : i32
    %c1_i32 = arith.constant 1 : i32
    scf.for %arg4 = %c0_i32 to %1 step %c1_i32  : i32 {
      %c1_i32_1 = arith.constant 1 : i32
      %2 = arith.muli %arg4, %c1_i32_1 : i32
      %c0_i32_2 = arith.constant 0 : i32
      %3 = arith.addi %c0_i32_2, %2 : i32
      %c8_i32 = arith.constant 8 : i32
      %4 = arith.muli %3, %c8_i32 : i32
      %5 = tpu.assume_multiple %4, 8 : i32
      %c0_i32_3 = arith.constant 0 : i32
      %6 = arith.addi %5, %c0_i32_3 : i32
      %7 = arith.addi %0, %6 : i32
      %8 = arith.index_cast %7 : i32 to index
      %9 = memref.load %arg1[%8] : memref<16xi32, #tpu.memory_space<smem>>
      %10 = arith.index_cast %9 : i32 to index
      %c0 = arith.constant 0 : index
      %11 = vector.load %arg2[%10, %c0] : memref<512x128xf32, #tpu.memory_space<vmem>>, vector<1x128xf32>
      %cst = arith.constant 11.3137083 : f32
      %12 = vector.broadcast %cst : f32 to vector<1x128xf32>
      %13 = arith.mulf %11, %12 : vector<1x128xf32>
      %14 = arith.index_cast %6 : i32 to index
      %c0_4 = arith.constant 0 : index
      %15 = vector.load %arg3[%14, %c0_4] : memref<16x128xf32, #tpu.memory_space<vmem>>, vector<1x128xf32>
      tpu.vector_store %arg3[%14, %c0_4], %13 {strides = array<i32>} : memref<16x128xf32, #tpu.memory_space<vmem>>, vector<1x128xf32>,
      %c1_i32_5 = arith.constant 1 : i32
      %16 = arith.addi %5, %c1_i32_5 : i32
      %17 = arith.addi %0, %16 : i32
      %18 = arith.index_cast %17 : i32 to index
      %19 = memref.load %arg1[%18] : memref<16xi32, #tpu.memory_space<smem>>
      %20 = arith.index_cast %19 : i32 to index
      %c0_6 = arith.constant 0 : index
      %21 = vector.load %arg2[%20, %c0_6] : memref<512x128xf32, #tpu.memory_space<vmem>>, vector<1x128xf32>
      %cst_7 = arith.constant 11.3137083 : f32
      %22 = vector.broadcast %cst_7 : f32 to vector<1x128xf32>
      %23 = arith.mulf %21, %22 : vector<1x128xf32>
      %24 = arith.index_cast %16 : i32 to index
      %c0_8 = arith.constant 0 : index
      %25 = vector.load %arg3[%24, %c0_8] : memref<16x128xf32, #tpu.memory_space<vmem>>, vector<1x128xf32>
      tpu.vector_store %arg3[%24, %c0_8], %23 {strides = array<i32>} : memref<16x128xf32, #tpu.memory_space<vmem>>, vector<1x128xf32>,
      %c2_i32_9 = arith.constant 2 : i32
      %26 = arith.addi %5, %c2_i32_9 : i32
      %27 = arith.addi %0, %26 : i32
      %28 = arith.index_cast %27 : i32 to index
      %29 = memref.load %arg1[%28] : memref<16xi32, #tpu.memory_space<smem>>
      %30 = arith.index_cast %29 : i32 to index
      %c0_10 = arith.constant 0 : index
      %31 = vector.load %arg2[%30, %c0_10] : memref<512x128xf32, #tpu.memory_space<vmem>>, vector<1x128xf32>
      %cst_11 = arith.constant 11.3137083 : f32
      %32 = vector.broadcast %cst_11 : f32 to vector<1x128xf32>
      %33 = arith.mulf %31, %32 : vector<1x128xf32>
      %34 = arith.index_cast %26 : i32 to index
      %c0_12 = arith.constant 0 : index
      %35 = vector.load %arg3[%34, %c0_12] : memref<16x128xf32, #tpu.memory_space<vmem>>, vector<1x128xf32>
      tpu.vector_store %arg3[%34, %c0_12], %33 {strides = array<i32>} : memref<16x128xf32, #tpu.memory_space<vmem>>, vector<1x128xf32>,
      %c3_i32 = arith.constant 3 : i32
      %36 = arith.addi %5, %c3_i32 : i32
      %37 = arith.addi %0, %36 : i32
      %38 = arith.index_cast %37 : i32 to index
      %39 = memref.load %arg1[%38] : memref<16xi32, #tpu.memory_space<smem>>
      %40 = arith.index_cast %39 : i32 to index
      %c0_13 = arith.constant 0 : index
      %41 = vector.load %arg2[%40, %c0_13] : memref<512x128xf32, #tpu.memory_space<vmem>>, vector<1x128xf32>
      %cst_14 = arith.constant 11.3137083 : f32
      %42 = vector.broadcast %cst_14 : f32 to vector<1x128xf32>
      %43 = arith.mulf %41, %42 : vector<1x128xf32>
      %44 = arith.index_cast %36 : i32 to index
      %c0_15 = arith.constant 0 : index
      %45 = vector.load %arg3[%44, %c0_15] : memref<16x128xf32, #tpu.memory_space<vmem>>, vector<1x128xf32>
      tpu.vector_store %arg3[%44, %c0_15], %43 {strides = array<i32>} : memref<16x128xf32, #tpu.memory_space<vmem>>, vector<1x128xf32>,
      %c4_i32 = arith.constant 4 : i32
      %46 = arith.addi %5, %c4_i32 : i32
      %47 = arith.addi %0, %46 : i32
      %48 = arith.index_cast %47 : i32 to index
      %49 = memref.load %arg1[%48] : memref<16xi32, #tpu.memory_space<smem>>
      %50 = arith.index_cast %49 : i32 to index
      %c0_16 = arith.constant 0 : index
      %51 = vector.load %arg2[%50, %c0_16] : memref<512x128xf32, #tpu.memory_space<vmem>>, vector<1x128xf32>
      %cst_17 = arith.constant 11.3137083 : f32
      %52 = vector.broadcast %cst_17 : f32 to vector<1x128xf32>
      %53 = arith.mulf %51, %52 : vector<1x128xf32>
      %54 = arith.index_cast %46 : i32 to index
      %c0_18 = arith.constant 0 : index
      %55 = vector.load %arg3[%54, %c0_18] : memref<16x128xf32, #tpu.memory_space<vmem>>, vector<1x128xf32>
      tpu.vector_store %arg3[%54, %c0_18], %53 {strides = array<i32>} : memref<16x128xf32, #tpu.memory_space<vmem>>, vector<1x128xf32>,
      %c5_i32 = arith.constant 5 : i32
      %56 = arith.addi %5, %c5_i32 : i32
      %57 = arith.addi %0, %56 : i32
      %58 = arith.index_cast %57 : i32 to index
      %59 = memref.load %arg1[%58] : memref<16xi32, #tpu.memory_space<smem>>
      %60 = arith.index_cast %59 : i32 to index
      %c0_19 = arith.constant 0 : index
      %61 = vector.load %arg2[%60, %c0_19] : memref<512x128xf32, #tpu.memory_space<vmem>>, vector<1x128xf32>
      %cst_20 = arith.constant 11.3137083 : f32
      %62 = vector.broadcast %cst_20 : f32 to vector<1x128xf32>
      %63 = arith.mulf %61, %62 : vector<1x128xf32>
      %64 = arith.index_cast %56 : i32 to index
      %c0_21 = arith.constant 0 : index
      %65 = vector.load %arg3[%64, %c0_21] : memref<16x128xf32, #tpu.memory_space<vmem>>, vector<1x128xf32>
      tpu.vector_store %arg3[%64, %c0_21], %63 {strides = array<i32>} : memref<16x128xf32, #tpu.memory_space<vmem>>, vector<1x128xf32>,
      %c6_i32 = arith.constant 6 : i32
      %66 = arith.addi %5, %c6_i32 : i32
      %67 = arith.addi %0, %66 : i32
      %68 = arith.index_cast %67 : i32 to index
      %69 = memref.load %arg1[%68] : memref<16xi32, #tpu.memory_space<smem>>
      %70 = arith.index_cast %69 : i32 to index
      %c0_22 = arith.constant 0 : index
      %71 = vector.load %arg2[%70, %c0_22] : memref<512x128xf32, #tpu.memory_space<vmem>>, vector<1x128xf32>
      %cst_23 = arith.constant 11.3137083 : f32
      %72 = vector.broadcast %cst_23 : f32 to vector<1x128xf32>
      %73 = arith.mulf %71, %72 : vector<1x128xf32>
      %74 = arith.index_cast %66 : i32 to index
      %c0_24 = arith.constant 0 : index
      %75 = vector.load %arg3[%74, %c0_24] : memref<16x128xf32, #tpu.memory_space<vmem>>, vector<1x128xf32>
      tpu.vector_store %arg3[%74, %c0_24], %73 {strides = array<i32>} : memref<16x128xf32, #tpu.memory_space<vmem>>, vector<1x128xf32>,
      %c7_i32 = arith.constant 7 : i32
      %76 = arith.addi %5, %c7_i32 : i32
      %77 = arith.addi %0, %76 : i32
      %78 = arith.index_cast %77 : i32 to index
      %79 = memref.load %arg1[%78] : memref<16xi32, #tpu.memory_space<smem>>
      %80 = arith.index_cast %79 : i32 to index
      %c0_25 = arith.constant 0 : index
      %81 = vector.load %arg2[%80, %c0_25] : memref<512x128xf32, #tpu.memory_space<vmem>>, vector<1x128xf32>
      %cst_26 = arith.constant 11.3137083 : f32
      %82 = vector.broadcast %cst_26 : f32 to vector<1x128xf32>
      %83 = arith.mulf %81, %82 : vector<1x128xf32>
      %84 = arith.index_cast %76 : i32 to index
      %c0_27 = arith.constant 0 : index
      %85 = vector.load %arg3[%84, %c0_27] : memref<16x128xf32, #tpu.memory_space<vmem>>, vector<1x128xf32>
      tpu.vector_store %arg3[%84, %c0_27], %83 {strides = array<i32>} : memref<16x128xf32, #tpu.memory_space<vmem>>, vector<1x128xf32>,
    }
    %c2_i32_0 = arith.constant 2 : i32
    return
  }
  func.func @transform_0(%arg0: i32, %arg1: memref<16xi32, #tpu.memory_space<smem>>) -> (i32, i32) {
    %c0_i32 = arith.constant 0 : i32
    %c0_i32_0 = arith.constant 0 : i32
    %c0_i32_1 = arith.constant 0 : i32
    return %c0_i32, %c0_i32_0 : i32, i32
  }
  func.func @transform_1(%arg0: i32, %arg1: memref<16xi32, #tpu.memory_space<smem>>) -> (i32, i32) {
    %c0_i32 = arith.constant 0 : i32
    %c0_i32_0 = arith.constant 0 : i32
    return %arg0, %c0_i32 : i32, i32
  }
}

</mosaic_0001>

<llo_original>
// kernel: tpu_custom_call.1
$region0: #{tpu_custom_call.1}
  #allocation0 [shape = 'u32[]', space=smem, size = 0x4, offset = 0x4, fixed_abs, tag = 'smem constant byte address 0x4 - core index']
  #allocation1 [shape = 'u32[144,128]{1,0:T(1,128)}', space=vmem, size = 0x12000, scoped, tag = 'internal scratch']
  #allocation2 [shape = 's32[1]{0}', space=sflag, size = 0x4, scoped, tag = 'scoped memory for tpu_custom_call.1']
  #allocation3 [shape = 'u8[512]{0}', space=smem, size = 0x200, scoped, tag = 'prefetched SMEM operand 0']
  %s0 = inlined_call_operand.hbm [shape: s32[16], index: 0, kind: input, shape index: {}]
  %s1 = inlined_call_operand.hbm [shape: f32[512,128], index: 1, kind: input, shape index: {}]
  %s2 = inlined_call_operand.hbm [shape: f32[16,128], index: 2, kind: output, shape index: {}]
  %s3 = sld [smem:[#allocation0]]
  $region25: #{tpu_custom_call.1} parent=0
    _
  %s5 = ssub.s32 1, %s3
  %s6 = scalar_select 0, %s5, %s3
  %8 = dma.hbm_to_smem %s0, 16, [#allocation3], [#allocation2]
  %9 = dma.done [#allocation2], 16
  %10 = sfence
  $region1: #{tpu_custom_call.1} parent=0
    #allocation4 [shape = 'u8[262144]{0}', space=vmem, size = 0x40000, scoped, tag = 'input window, operand 1, single buffered']
    #allocation5 [shape = 's32[1]{0}', space=sflag, size = 0x4, scoped, tag = 'scoped memory for tpu_custom_call.1']
    #allocation6 [shape = 's32[1]{0}', space=sflag, size = 0x4, scoped, tag = 'scoped memory for tpu_custom_call.1']
    #allocation7 [shape = 'u8[8192]{0}', space=vmem, size = 0x2000, scoped, tag = 'output window, operand 0, single buffered']
    %11 = vsyncpa [#allocation5], 0
    %12 = vsyncpa [#allocation6], 0
    // Predicated region
    $region2: #{tpu_custom_call.1} parent=1 // pred_check
      _
    $region3: #{tpu_custom_call.1} parent=1 // pred_check_branch
      %14 = sbr.rel (0) target = $region5
    $region4: #{tpu_custom_call.1} parent=1 // pred_region
      %s16 = ssub.s32 8192, 8192
      %17 = vsyncadd [#allocation5], %s16
      %s18 = sshll.u32 [#allocation4], 4
      %s19 = int_to_ptr.vmem [resolvable:$true] %s18
      %24 = dma.hbm_to_vmem [thread:$0]  %s1, 8192, %s19, [#allocation5], 128, 128, 8
    $region5: #{tpu_custom_call.1} parent=1 // pred_fallthru
      _
    // Predicated region
    $region6: #{tpu_custom_call.1} parent=1 // pred_check
      _
    $region7: #{tpu_custom_call.1} parent=1 // pred_check_branch
      %26 = sbr.rel (0) target = $region9
    $region8: #{tpu_custom_call.1} parent=1 // pred_region
      %27 = dma.done [#allocation5], 8192
    $region9: #{tpu_custom_call.1} parent=1 // pred_fallthru
      _
    %s28 = smul.u32 0, 16
    loop: start=0, step=1, limit=2
    $region10: #{tpu_custom_call.1} parent=1 // loop_pre_header
      _
    $region11: #{tpu_custom_call.1} parent=1 // loop_header
      %s30 = sphi 0, %s34
      %p31 = scmp.ge.s32.totalorder %s30, 2
    $region12: #{tpu_custom_call.1} parent=1 // loop_header_branch
      %33 = sbr.rel (%p31) target = $region16
    $region13: #{tpu_custom_call.1} parent=1 // loop_body
      %s35 = smul.u32 %s30, 8
      %s36 = sadd.s32 %s28, %s35
      %s37 = sld [smem:[#allocation3 + %s36]]
      %s38 = scalar_lea.vmem [#allocation4], %s37
      %v39 = vld [vmem:[%s38] sm:$0x1]
      %v40 = vmul.f32 %v39, 11.313708
      %s41 = scalar_lea.vmem [#allocation7], %s35
      %42 = vst [vmem:[%s41] sm:$0x1] %v40
      %s43 = sadd.s32 %s35, 1
      %s44 = sadd.s32 %s28, %s43
      %s45 = sld [smem:[#allocation3 + %s44]]
      %s46 = scalar_lea.vmem [#allocation4], %s45
      %v47 = vld [vmem:[%s46] sm:$0x1]
      %v48 = vmul.f32 %v47, 11.313708
      %s49 = scalar_lea.vmem [#allocation7], %s43
      %50 = vst [vmem:[%s49] sm:$0x1] %v48
      %s51 = sadd.s32 %s35, 2
      %s52 = sadd.s32 %s28, %s51
      %s53 = sld [smem:[#allocation3 + %s52]]
      %s54 = scalar_lea.vmem [#allocation4], %s53
      %v55 = vld [vmem:[%s54] sm:$0x1]
      %v56 = vmul.f32 %v55, 11.313708
      %s57 = scalar_lea.vmem [#allocation7], %s51
      %58 = vst [vmem:[%s57] sm:$0x1] %v56
      %s59 = sadd.s32 %s35, 3
      %s60 = sadd.s32 %s28, %s59
      %s61 = sld [smem:[#allocation3 + %s60]]
      %s62 = scalar_lea.vmem [#allocation4], %s61
      %v63 = vld [vmem:[%s62] sm:$0x1]
      %v64 = vmul.f32 %v63, 11.313708
      %s65 = scalar_lea.vmem [#allocation7], %s59
      %66 = vst [vmem:[%s65] sm:$0x1] %v64
      %s67 = sadd.s32 %s35, 4
      %s68 = sadd.s32 %s28, %s67
      %s69 = sld [smem:[#allocation3 + %s68]]
      %s70 = scalar_lea.vmem [#allocation4], %s69
      %v71 = vld [vmem:[%s70] sm:$0x1]
      %v72 = vmul.f32 %v71, 11.313708
      %s73 = scalar_lea.vmem [#allocation7], %s67
      %74 = vst [vmem:[%s73] sm:$0x1] %v72
      %s75 = sadd.s32 %s35, 5
      %s76 = sadd.s32 %s28, %s75
      %s77 = sld [smem:[#allocation3 + %s76]]
      %s78 = scalar_lea.vmem [#allocation4], %s77
      %v79 = vld [vmem:[%s78] sm:$0x1]
      %v80 = vmul.f32 %v79, 11.313708
      %s81 = scalar_lea.vmem [#allocation7], %s75
      %82 = vst [vmem:[%s81] sm:$0x1] %v80
      %s83 = sadd.s32 %s35, 6
      %s84 = sadd.s32 %s28, %s83
      %s85 = sld [smem:[#allocation3 + %s84]]
      %s86 = scalar_lea.vmem [#allocation4], %s85
      %v87 = vld [vmem:[%s86] sm:$0x1]
      %v88 = vmul.f32 %v87, 11.313708
      %s89 = scalar_lea.vmem [#allocation7], %s83
      %90 = vst [vmem:[%s89] sm:$0x1] %v88
      %s91 = sadd.s32 %s35, 7
      %s92 = sadd.s32 %s28, %s91
      %s93 = sld [smem:[#allocation3 + %s92]]
      %s94 = scalar_lea.vmem [#allocation4], %s93
      %v95 = vld [vmem:[%s94] sm:$0x1]
      %v96 = vmul.f32 %v95, 11.313708
      %s97 = scalar_lea.vmem [#allocation7], %s91
      %98 = vst [vmem:[%s97] sm:$0x1] %v96
    $region14: #{tpu_custom_call.1} parent=1 // loop_footer
      %s34 = sadd.s32 1, %s30
    $region15: #{tpu_custom_call.1} parent=1 // loop_footer_branch
      %29 = sbr.rel target = $region11
    $region16: #{tpu_custom_call.1} parent=1 // loop_exit
      _
    // Predicated region
    $region17: #{tpu_custom_call.1} parent=1 // pred_check
      _
    $region18: #{tpu_custom_call.1} parent=1 // pred_check_branch
      %100 = sbr.rel (0) target = $region20
    $region19: #{tpu_custom_call.1} parent=1 // pred_region
      %s102 = ssub.s32 256, 256
      %103 = vsyncadd [#allocation6], %s102
      %s104 = sshll.u32 [#allocation7], 4
      %s105 = int_to_ptr.vmem [resolvable:$true] %s104
      %110 = dma.vmem_to_hbm [thread:$0]  %s105, 256, %s2, [#allocation6], 128, 128, 8
    $region20: #{tpu_custom_call.1} parent=1 // pred_fallthru
      _
    // Predicated region
    $region21: #{tpu_custom_call.1} parent=1 // pred_check
      _
    $region22: #{tpu_custom_call.1} parent=1 // pred_check_branch
      %112 = sbr.rel (0) target = $region24
    $region23: #{tpu_custom_call.1} parent=1 // pred_region
      %113 = dma.done [#allocation6], 256
    $region24: #{tpu_custom_call.1} parent=1 // pred_fallthru
      _
    %114 = vsyncpa [#allocation5], 1
    %115 = vsyncpa [#allocation6], 1

</llo_original>
